<compile_context>
chip_gen: v6e
topology: v6e:2x2x1
jax: 0.10.0
libtpu: 0.0.40
codegen_flags: <defaults>
</compile_context>

<pallas_src>
import jax
import jax.numpy as jnp
from jax.experimental import pallas as pl
from jax.experimental.pallas import tpu as pltpu


# -----------------------------------------------------------------------------
# Primary path: zero-copy identity (aliased output, no data movement).
# -----------------------------------------------------------------------------
def _alias_identity_kernel(x_ref, o_ref):
    # Output buffer aliases the input buffer; the forward pass `return x`
    # therefore needs no loads/stores at all.  touch() marks the aliased
    # output as accessed so the (side-effecting) call is kept and ordered.
    del x_ref
    pltpu.touch(o_ref)


def _identity_zero_copy(x):
    return pl.pallas_call(
        _alias_identity_kernel,
        out_shape=jax.ShapeDtypeStruct(x.shape, x.dtype),
        in_specs=[pl.BlockSpec(memory_space=pl.ANY)],
        out_specs=pl.BlockSpec(memory_space=pl.ANY),
        input_output_aliases={0: 0},
        compiler_params=pltpu.CompilerParams(has_side_effects=True),
    )(x)


# -----------------------------------------------------------------------------
# Fallback path: explicit VMEM-staged copy (only used if the aliased no-op
# variant fails to lower on the local jax/libtpu build).
# -----------------------------------------------------------------------------
def _copy_kernel(x_ref, o_ref):
    o_ref[...] = x_ref[...]


_LANE = 128
# Per-buffer tile cap: in + out, each double-buffered, is 4x this (= 8 MiB),
# safely inside v5e's 16 MiB default scoped-VMEM limit; >=512-lane rows already
# sit near the HBM roofline, so larger tiles buy nothing.
_MAX_TILE_BYTES = 2 * 1024 * 1024


def _sublanes_for(dtype):
    # Packed-sublane height of one vreg: 8 for 32-bit, 16 for 16-bit, 32 for 8-bit.
    return max(8, 32 // max(1, jnp.dtype(dtype).itemsize))


def _identity_copy(x):
    orig_shape = x.shape
    dtype = x.dtype
    n = x.size
    itemsize = jnp.dtype(dtype).itemsize
    sub = _sublanes_for(dtype)
    unit = sub * _LANE

    flat = x.reshape(-1)
    pad = (-n) % unit
    if pad:
        # Tail-pad so the copy maps onto whole packed vregs (sliced off below)
        # instead of forcing a masked 1-row layout or a giant single block.
        flat = jnp.pad(flat, (0, pad))
    total = flat.size

    if total * itemsize <= _MAX_TILE_BYTES:
        # Small: whole tensor as one lane-dense block, no grid / pipeline
        # scaffolding, single VMEM-resident invocation.
        x2d = flat.reshape(sub, total // sub)
        out2d = pl.pallas_call(
            _copy_kernel,
            out_shape=jax.ShapeDtypeStruct(x2d.shape, dtype),
            in_specs=[pl.BlockSpec(memory_space=pltpu.MemorySpace.VMEM)],
            out_specs=pl.BlockSpec(memory_space=pltpu.MemorySpace.VMEM),
        )(x2d)
        out_flat = out2d.reshape(-1)
    else:
        # Large: lane-dense tiled copy; rows sharded across cores.
        cols = _LANE
        while total % (cols * 2) == 0 and cols * 2 * sub * itemsize <= _MAX_TILE_BYTES:
            cols *= 2
        rows = total // cols
        block_rows = max(sub, (_MAX_TILE_BYTES // (cols * itemsize)) // sub * sub)
        block_rows = min(block_rows, max(sub, (rows // sub) * sub))
        x2d = flat.reshape(rows, cols)
        out2d = pl.pallas_call(
            _copy_kernel,
            out_shape=jax.ShapeDtypeStruct((rows, cols), dtype),
            grid=(pl.cdiv(rows, block_rows),),
            in_specs=[pl.BlockSpec((block_rows, cols), lambda i: (i, 0))],
            out_specs=pl.BlockSpec((block_rows, cols), lambda i: (i, 0)),
            compiler_params=pltpu.CompilerParams(
                dimension_semantics=("parallel",),
            ),
        )(x2d)
        out_flat = out2d.reshape(-1)

    if pad:
        out_flat = out_flat[:n]
    return out_flat.reshape(orig_shape)


# -----------------------------------------------------------------------------
# Public wrapper.
# -----------------------------------------------------------------------------
_USE_ZERO_COPY = True


def identity_pallas(x):
    """Forward pass of Model: return x."""
    global _USE_ZERO_COPY
    if x.size == 0:
        return x
    if _USE_ZERO_COPY:
        try:
            y = _identity_zero_copy(x)
            jax.block_until_ready(y)
            return y
        except Exception:
            # Portability fallback only; the zero-copy path is the intended one.
            _USE_ZERO_COPY = False
    return _identity_copy(x)


if __name__ == "__main__":
    key = jax.random.PRNGKey(0)
    x = jax.random.normal(key, (2, 4, 16, 16), dtype=jnp.float32)

    y = identity_pallas(x)
    jax.block_until_ready(y)

    assert y.shape == x.shape
    assert y.dtype == x.dtype
    assert bool(jnp.all(y == x))

    print("KERNEL_OK")
</pallas_src>

<mosaic_0001>
module attributes {stable_mosaic.version = 11 : i64} {
  func.func @_alias_identity_kernel(%arg0: memref<2x4x16x16xf32, #tpu.memory_space<any>>, %arg1: memref<2x4x16x16xf32, #tpu.memory_space<any>>) attributes {dimension_semantics = [], scalar_prefetch = 0 : i64, scratch_operands = 0 : i64, tpu.core_type = #tpu.core_type<tc>} {
    return
  }
}

module attributes {stable_mosaic.version = 11 : i64} {
  func.func @_copy_kernel(%arg0: memref<8x256xf32, #tpu.memory_space<vmem>>, %arg1: memref<8x256xf32, #tpu.memory_space<vmem>>) attributes {dimension_semantics = [], scalar_prefetch = 0 : i64, scratch_operands = 0 : i64, tpu.core_type = #tpu.core_type<tc>} {
    %c0 = arith.constant 0 : index
    %c0_0 = arith.constant 0 : index
    %0 = vector.load %arg0[%c0, %c0_0] : memref<8x256xf32, #tpu.memory_space<vmem>>, vector<8x256xf32>
    %c0_1 = arith.constant 0 : index
    %c0_2 = arith.constant 0 : index
    %1 = vector.load %arg1[%c0_1, %c0_2] : memref<8x256xf32, #tpu.memory_space<vmem>>, vector<8x256xf32>
    tpu.vector_store %arg1[%c0_1, %c0_2], %0 {strides = array<i32>} : memref<8x256xf32, #tpu.memory_space<vmem>>, vector<8x256xf32>,
    return
  }
}

</mosaic_0001>

<llo_original>
// kernel: tpu_custom_call.1
$region0: #{tpu_custom_call.1}
  #allocation0 [shape = 'u32[]', space=smem, size = 0x4, offset = 0x4, fixed_abs, tag = 'smem constant byte address 0x4 - core index']
  #allocation1 [shape = 'u32[144,128]{1,0:T(1,128)}', space=vmem, size = 0x12000, scoped, tag = 'internal scratch']
  %s0 = inlined_call_operand.hbm [shape: f32[2,4,16,16], index: 0, kind: input, shape index: {}, may-alias: {0,1}]
  %s1 = inlined_call_operand.hbm [shape: f32[2,4,16,16], index: 1, kind: output, shape index: {}, may-alias: {0,1}]
  %s2 = sld [smem:[#allocation0]]
  $region2: #{tpu_custom_call.1} parent=0
    _
  %s4 = ssub.s32 1, %s2
  %s5 = scalar_select 0, %s4, %s2

// kernel: tpu_custom_call.1
$region0: #{tpu_custom_call.1}
  #allocation0 [shape = 'u32[]', space=smem, size = 0x4, offset = 0x4, fixed_abs, tag = 'smem constant byte address 0x4 - core index']
  #allocation1 [shape = 'u32[144,128]{1,0:T(1,128)}', space=vmem, size = 0x12000, scoped, tag = 'internal scratch']
  %s0 = inlined_call_operand.hbm [shape: f32[8,256], index: 0, kind: input, shape index: {}]
  %s1 = inlined_call_operand.hbm [shape: f32[8,256], index: 1, kind: output, shape index: {}]
  %s2 = sld [smem:[#allocation0]]
  $region18: #{tpu_custom_call.1} parent=0
    _
  %s4 = ssub.s32 1, %s2
  %s5 = scalar_select 0, %s4, %s2
  $region1: #{tpu_custom_call.1} parent=0
    #allocation2 [shape = 'u8[8192]{0}', space=vmem, size = 0x2000, scoped, tag = 'input window, operand 0, single buffered']
    #allocation3 [shape = 's32[1]{0}', space=sflag, size = 0x4, scoped, tag = 'scoped memory for tpu_custom_call.1']
    #allocation4 [shape = 's32[1]{0}', space=sflag, size = 0x4, scoped, tag = 'scoped memory for tpu_custom_call.1']
    #allocation5 [shape = 'u8[8192]{0}', space=vmem, size = 0x2000, scoped, tag = 'output window, operand 0, single buffered']
    %6 = vsyncpa [#allocation3], 0
    %7 = vsyncpa [#allocation4], 0
    // Predicated region
    $region2: #{tpu_custom_call.1} parent=1 // pred_check
      _
    $region3: #{tpu_custom_call.1} parent=1 // pred_check_branch
      %9 = sbr.rel (0) target = $region5
    $region4: #{tpu_custom_call.1} parent=1 // pred_region
      %s11 = ssub.s32 256, 256
      %12 = vsyncadd [#allocation3], %s11
      %s14 = sshll.u32 [#allocation2], 4
      %s15 = int_to_ptr.vmem [resolvable:$true] %s14
      %17 = dma.hbm_to_vmem [thread:$0]  %s0, 256, %s15, [#allocation3]
    $region5: #{tpu_custom_call.1} parent=1 // pred_fallthru
      _
    // Predicated region
    $region6: #{tpu_custom_call.1} parent=1 // pred_check
      _
    $region7: #{tpu_custom_call.1} parent=1 // pred_check_branch
      %19 = sbr.rel (0) target = $region9
    $region8: #{tpu_custom_call.1} parent=1 // pred_region
      %20 = dma.done [#allocation3], 256
    $region9: #{tpu_custom_call.1} parent=1 // pred_fallthru
      _
    %v21 = vld [vmem:[#allocation2] sm:$0xff]
    %v22 = vld [vmem:[#allocation2 + $0x8] sm:$0xff]
    %23 = vst [vmem:[#allocation5] sm:$0xff] %v21
    %24 = vst [vmem:[#allocation5 + $0x8] sm:$0xff] %v22
    // Predicated region
    $region10: #{tpu_custom_call.1} parent=1 // pred_check
      _
    $region11: #{tpu_custom_call.1} parent=1 // pred_check_branch
      %26 = sbr.rel (0) target = $region13
    $region12: #{tpu_custom_call.1} parent=1 // pred_region
      %s28 = ssub.s32 256, 256
      %29 = vsyncadd [#allocation4], %s28
      %s31 = sshll.u32 [#allocation5], 4
      %s32 = int_to_ptr.vmem [resolvable:$true] %s31
      %34 = dma.vmem_to_hbm [thread:$0]  %s32, 256, %s1, [#allocation4]
    $region13: #{tpu_custom_call.1} parent=1 // pred_fallthru
      _
    // Predicated region
    $region14: #{tpu_custom_call.1} parent=1 // pred_check
      _
    $region15: #{tpu_custom_call.1} parent=1 // pred_check_branch
      %36 = sbr.rel (0) target = $region17
    $region16: #{tpu_custom_call.1} parent=1 // pred_region
      %37 = dma.done [#allocation4], 256
    $region17: #{tpu_custom_call.1} parent=1 // pred_fallthru
      _
    %38 = vsyncpa [#allocation3], 1
    %39 = vsyncpa [#allocation4], 1

</llo_original>
